<compile_context>
chip_gen: v7x
topology: tpu7x:2x2x1
jax: 0.10.0
libtpu: 0.0.40
codegen_flags: <defaults>
</compile_context>

<pallas_src>
import jax
import jax.numpy as jnp
from jax.experimental import pallas as pl
from jax.experimental.pallas import tpu as pltpu


def _attention_kernel(q_ref, k_ref, v_ref, wk_ref, bk_ref, o_ref):
    bb, sk, din = k_ref.shape           # block-batch, key length, in features
    dout = wk_ref.shape[-1]

    q = q_ref[...]                      # (bb, Sq, Dout)
    k = k_ref[...]                      # (bb, Sk, Din)
    v = v_ref[...]                      # (bb, Sk, Dv)
    wk = wk_ref[...]                    # (Din, Dout)
    bk = bk_ref[...]                    # (1, Dout) f32

    # proj_k = k @ Wk^T + b. Weight is shared across batch, so collapse the
    # leading dims (minor/lane dim unchanged -> cheap, supported reshape) and
    # run one MXU matmul over all bb*Sk rows.
    k2 = k.reshape(bb * sk, din)
    proj = jnp.dot(k2, wk, preferred_element_type=jnp.float32) + bk   # f32
    proj_k = proj.reshape(bb, sk, dout).astype(q.dtype)

    # scores = q @ proj_k^T, expressed as a batched dot_general contracting the
    # last dim of both operands (no explicit transpose of proj_k).
    scores = jnp.einsum("bqe,bke->bqk", q, proj_k,
                        preferred_element_type=jnp.float32)           # (bb,Sq,Sk) f32

    # Numerically stable softmax along Sk, all in f32.
    m = jnp.max(scores, axis=-1, keepdims=True)
    e = jnp.exp(scores - m)
    denom = jnp.sum(e, axis=-1, keepdims=True)
    att = e * pl.reciprocal(denom, approx=True)                       # EUP vrcp

    out = jnp.einsum("bqk,bkv->bqv", att.astype(v.dtype), v,
                     preferred_element_type=jnp.float32)              # (bb,Sq,Dv) f32
    o_ref[...] = out.astype(o_ref.dtype)


def attention_forward(q, k, v, wk_t, bk, *, block_b=None):
    """SoP++ Attention forward.

    q: (B, Sq, Dout)   (used un-projected, as in the PyTorch forward)
    k: (B, Sk, Din)
    v: (B, Sk, Dv)     (used un-projected)
    wk_t: (Din, Dout)  proj_k weight, pre-transposed
    bk: (1, Dout)      proj_k bias (kept f32)
    returns: (B, Sq, Dv) in q.dtype
    """
    B, Sq, Dq = q.shape
    _, Sk, Din = k.shape
    Dv = v.shape[-1]
    Dout = wk_t.shape[-1]
    assert Dq == Dout, "q feature dim must equal proj_k output dim"

    bb = B if block_b is None else block_b
    assert B % bb == 0, "block_b must divide B"
    grid = (B // bb,)

    return pl.pallas_call(
        _attention_kernel,
        out_shape=jax.ShapeDtypeStruct((B, Sq, Dv), q.dtype),
        grid_spec=pltpu.PrefetchScalarGridSpec(
            num_scalar_prefetch=0,
            grid=grid,
            in_specs=[
                pl.BlockSpec((bb, Sq, Dq), lambda b: (b, 0, 0)),
                pl.BlockSpec((bb, Sk, Din), lambda b: (b, 0, 0)),
                pl.BlockSpec((bb, Sk, Dv), lambda b: (b, 0, 0)),
                # shared weight/bias: constant index_map -> resident, no re-DMA
                pl.BlockSpec((Din, Dout), lambda b: (0, 0)),
                pl.BlockSpec((1, Dout), lambda b: (0, 0)),
            ],
            out_specs=pl.BlockSpec((bb, Sq, Dv), lambda b: (b, 0, 0)),
        ),
        compiler_params=pltpu.CompilerParams(
            dimension_semantics=("parallel",),
            vmem_limit_bytes=32 * 1024 * 1024,
        ),
    )(q, k, v, wk_t, bk)


def reference_forward(q, k, v, wk_t, bk):
    proj_k = jnp.einsum("bsd,de->bse", k, wk_t) + bk[None]
    scores = jnp.einsum("bqe,bke->bqk", q, proj_k)
    att = jax.nn.softmax(scores, axis=-1)
    return jnp.einsum("bqk,bkv->bqv", att, v)


if __name__ == "__main__":
    # Small shapes consistent with the module: in_cn=32, out_cn=32.
    B, Sq, Sk, in_cn, out_cn = 2, 8, 8, 32, 32
    key = jax.random.PRNGKey(0)
    kq, kk, kv, kw, kb = jax.random.split(key, 5)

    q = jax.random.normal(kq, (B, Sq, out_cn), dtype=jnp.float32)
    k = jax.random.normal(kk, (B, Sk, in_cn), dtype=jnp.float32)
    v = jax.random.normal(kv, (B, Sk, out_cn), dtype=jnp.float32)

    # Deterministic proj_k parameters (nn.Linear(in_cn, out_cn)); pass W^T.
    wk = jax.random.normal(kw, (out_cn, in_cn), dtype=jnp.float32) * 0.1
    bk = jax.random.normal(kb, (out_cn,), dtype=jnp.float32) * 0.1
    wk_t = wk.T                        # (in_cn, out_cn)
    bk2 = bk.reshape(1, out_cn)

    # f32 path (matches module numerics; approx reciprocal -> ~1e-3 rel shift).
    out = attention_forward(q, k, v, wk_t, bk2)
    out = jax.block_until_ready(out)

    ref = reference_forward(q, k, v, wk_t, bk2)
    assert out.shape == (B, Sq, out_cn)
    assert jnp.allclose(out, ref, atol=5e-3, rtol=5e-3), "mismatch vs reference (f32)"

    # bf16-input MXU fast path (v5e/v6e/v7x); softmax/accumulation stays f32
    # inside the kernel. Looser tolerance: bf16 operand rounding shifts the
    # softmax weights by a few percent.
    out_bf16 = attention_forward(
        q.astype(jnp.bfloat16), k.astype(jnp.bfloat16), v.astype(jnp.bfloat16),
        wk_t.astype(jnp.bfloat16), bk2)
    out_bf16 = jax.block_until_ready(out_bf16)
    assert out_bf16.shape == (B, Sq, out_cn)
    assert jnp.allclose(out_bf16.astype(jnp.float32), ref, atol=2e-1, rtol=2e-1), \
        "mismatch vs reference (bf16)"

    print("KERNEL_OK")
</pallas_src>

<mosaic_0001>
module attributes {stable_mosaic.version = 11 : i64} {
  func.func @_attention_kernel(%arg0: i32, %arg1: memref<2x8x32xf32, #tpu.memory_space<vmem>>, %arg2: memref<2x8x32xf32, #tpu.memory_space<vmem>>, %arg3: memref<2x8x32xf32, #tpu.memory_space<vmem>>, %arg4: memref<32x32xf32, #tpu.memory_space<vmem>>, %arg5: memref<1x32xf32, #tpu.memory_space<vmem>>, %arg6: memref<2x8x32xf32, #tpu.memory_space<vmem>>) attributes {dimension_semantics = [#tpu.dimension_semantics<parallel>], iteration_bounds = array<i64: 1>, scalar_prefetch = 0 : i64, scratch_operands = 0 : i64, tpu.core_type = #tpu.core_type<tc>, window_params = [{transform_indices = @transform_0, window_bounds = array<i64: 2, 8, 32>}, {transform_indices = @transform_1, window_bounds = array<i64: 2, 8, 32>}, {transform_indices = @transform_2, window_bounds = array<i64: 2, 8, 32>}, {pipeline_mode = #tpu.pipeline_mode<synchronous>, transform_indices = @transform_3, window_bounds = array<i64: 32, 32>}, {pipeline_mode = #tpu.pipeline_mode<synchronous>, transform_indices = @transform_4, window_bounds = array<i64: 1, 32>}, {transform_indices = @transform_5, window_bounds = array<i64: 2, 8, 32>}]} {
    %c0 = arith.constant 0 : index
    %c0_0 = arith.constant 0 : index
    %c0_1 = arith.constant 0 : index
    %0 = vector.load %arg1[%c0, %c0_0, %c0_1] : memref<2x8x32xf32, #tpu.memory_space<vmem>>, vector<2x8x32xf32>
    %c0_2 = arith.constant 0 : index
    %c0_3 = arith.constant 0 : index
    %c0_4 = arith.constant 0 : index
    %1 = vector.load %arg2[%c0_2, %c0_3, %c0_4] : memref<2x8x32xf32, #tpu.memory_space<vmem>>, vector<2x8x32xf32>
    %c0_5 = arith.constant 0 : index
    %c0_6 = arith.constant 0 : index
    %c0_7 = arith.constant 0 : index
    %2 = vector.load %arg3[%c0_5, %c0_6, %c0_7] : memref<2x8x32xf32, #tpu.memory_space<vmem>>, vector<2x8x32xf32>
    %c0_8 = arith.constant 0 : index
    %c0_9 = arith.constant 0 : index
    %3 = vector.load %arg4[%c0_8, %c0_9] : memref<32x32xf32, #tpu.memory_space<vmem>>, vector<32x32xf32>
    %c0_10 = arith.constant 0 : index
    %c0_11 = arith.constant 0 : index
    %4 = vector.load %arg5[%c0_10, %c0_11] : memref<1x32xf32, #tpu.memory_space<vmem>>, vector<1x32xf32>
    %5 = vector.shape_cast %1 : vector<2x8x32xf32> to vector<16x32xf32>
    %cst = arith.constant dense<0.000000e+00> : vector<16x32xf32>
    %6 = tpu.matmul %5, %3, %cst {dimension_numbers = #tpu.dot_dimension_numbers<[1], [0], [0], [1], [0, 0, 1, 1], [], []>} : vector<16x32xf32>, vector<32x32xf32>, vector<16x32xf32> -> vector<16x32xf32>
    %7 = vector.broadcast %4 : vector<1x32xf32> to vector<16x32xf32>
    %8 = arith.addf %6, %7 : vector<16x32xf32>
    %9 = vector.shape_cast %8 : vector<16x32xf32> to vector<2x8x32xf32>
    "tpu.trace_start"() <{level = 10 : i32, message = "bqe,bke->bqk"}> : () -> ()
    %cst_12 = arith.constant dense<0.000000e+00> : vector<2x8x8xf32>
    %10 = tpu.matmul %0, %9, %cst_12 {dimension_numbers = #tpu.dot_dimension_numbers<[2], [2], [1], [1], [0, 0, 0, 1, 1, 1], [0], [0]>} : vector<2x8x32xf32>, vector<2x8x32xf32>, vector<2x8x8xf32> -> vector<2x8x8xf32>
    "tpu.trace_stop"() : () -> ()
    %cst_13 = arith.constant dense<0xFF800000> : vector<2x8xf32>
    %11 = vector.multi_reduction <maximumf>, %10, %cst_13 [2] : vector<2x8x8xf32> to vector<2x8xf32>
    %12 = vector.shape_cast %11 : vector<2x8xf32> to vector<2x8x1xf32>
    %13 = vector.broadcast %12 : vector<2x8x1xf32> to vector<2x8x8xf32>
    %14 = arith.subf %10, %13 : vector<2x8x8xf32>
    %15 = math.exp %14 : vector<2x8x8xf32>
    %cst_14 = arith.constant dense<0.000000e+00> : vector<2x8xf32>
    %16 = vector.multi_reduction <add>, %15, %cst_14 [2] : vector<2x8x8xf32> to vector<2x8xf32>
    %17 = vector.shape_cast %16 : vector<2x8xf32> to vector<2x8x1xf32>
    %18 = tpu.reciprocal %17 {approx = true} : vector<2x8x1xf32> -> vector<2x8x1xf32>
    %19 = vector.broadcast %18 : vector<2x8x1xf32> to vector<2x8x8xf32>
    %20 = arith.mulf %15, %19 : vector<2x8x8xf32>
    "tpu.trace_start"() <{level = 10 : i32, message = "bqk,bkv->bqv"}> : () -> ()
    %cst_15 = arith.constant dense<0.000000e+00> : vector<2x8x32xf32>
    %21 = tpu.matmul %20, %2, %cst_15 {dimension_numbers = #tpu.dot_dimension_numbers<[2], [1], [1], [2], [0, 0, 0, 1, 1, 2], [0], [0]>} : vector<2x8x8xf32>, vector<2x8x32xf32>, vector<2x8x32xf32> -> vector<2x8x32xf32>
    "tpu.trace_stop"() : () -> ()
    %c0_16 = arith.constant 0 : index
    %c0_17 = arith.constant 0 : index
    %c0_18 = arith.constant 0 : index
    %22 = vector.load %arg6[%c0_16, %c0_17, %c0_18] : memref<2x8x32xf32, #tpu.memory_space<vmem>>, vector<2x8x32xf32>
    tpu.vector_store %arg6[%c0_16, %c0_17, %c0_18], %21 {strides = array<i32>} : memref<2x8x32xf32, #tpu.memory_space<vmem>>, vector<2x8x32xf32>,
    return
  }
  func.func @transform_0(%arg0: i32) -> (i32, i32, i32) {
    %c0_i32 = arith.constant 0 : i32
    %c0_i32_0 = arith.constant 0 : i32
    %c0_i32_1 = arith.constant 0 : i32
    return %arg0, %c0_i32, %c0_i32_0 : i32, i32, i32
  }
  func.func @transform_1(%arg0: i32) -> (i32, i32, i32) {
    %c0_i32 = arith.constant 0 : i32
    %c0_i32_0 = arith.constant 0 : i32
    %c0_i32_1 = arith.constant 0 : i32
    return %arg0, %c0_i32, %c0_i32_0 : i32, i32, i32
  }
  func.func @transform_2(%arg0: i32) -> (i32, i32, i32) {
    %c0_i32 = arith.constant 0 : i32
    %c0_i32_0 = arith.constant 0 : i32
    %c0_i32_1 = arith.constant 0 : i32
    return %arg0, %c0_i32, %c0_i32_0 : i32, i32, i32
  }
  func.func @transform_3(%arg0: i32) -> (i32, i32) {
    %c0_i32 = arith.constant 0 : i32
    %c0_i32_0 = arith.constant 0 : i32
    %c0_i32_1 = arith.constant 0 : i32
    return %c0_i32, %c0_i32_0 : i32, i32
  }
  func.func @transform_4(%arg0: i32) -> (i32, i32) {
    %c0_i32 = arith.constant 0 : i32
    %c0_i32_0 = arith.constant 0 : i32
    %c0_i32_1 = arith.constant 0 : i32
    return %c0_i32, %c0_i32_0 : i32, i32
  }
  func.func @transform_5(%arg0: i32) -> (i32, i32, i32) {
    %c0_i32 = arith.constant 0 : i32
    %c0_i32_0 = arith.constant 0 : i32
    %c0_i32_1 = arith.constant 0 : i32
    return %arg0, %c0_i32, %c0_i32_0 : i32, i32, i32
  }
}

</mosaic_0001>

<llo_original>
// kernel: tpu_custom_call.1
$region0: #{tpu_custom_call.1}
  #allocation0 [shape = 'u32[]', space=smem, size = 0x4, offset = 0x4, fixed_abs, tag = 'smem constant byte address 0x4 - core index']
  #allocation1 [shape = 'u32[144,128]{1,0:T(1,128)}', space=vmem, size = 0x12000, scoped, tag = 'internal scratch']
  %s0 = inlined_call_operand.hbm [shape: f32[2,8,32], index: 0, kind: input, shape index: {}]
  %s1 = inlined_call_operand.hbm [shape: f32[2,8,32], index: 1, kind: input, shape index: {}]
  %s2 = inlined_call_operand.hbm [shape: f32[2,8,32], index: 2, kind: input, shape index: {}]
  %s3 = inlined_call_operand.hbm [shape: f32[32,32], index: 3, kind: input, shape index: {}]
  %s4 = inlined_call_operand.vmem [shape: f32[1,32], index: 4, kind: input, shape index: {}]
  %s5 = inlined_call_operand.hbm [shape: f32[2,8,32], index: 5, kind: output, shape index: {}]
  %s6 = sld [smem:[#allocation0]]
  $region46: #{tpu_custom_call.1} parent=0
    _
  %s8 = ssub.s32 1, %s6
  %s9 = scalar_select 0, %s8, %s6
  $region1: #{tpu_custom_call.1} parent=0
    #allocation2 [shape = 'u8[8192]{0}', space=vmem, size = 0x2000, scoped, tag = 'input window, operand 0, single buffered']
    #allocation3 [shape = 's32[1]{0}', space=sflag, size = 0x4, scoped, tag = 'scoped memory for tpu_custom_call.1']
    #allocation4 [shape = 's32[1]{0}', space=sflag, size = 0x4, scoped, tag = 'scoped memory for tpu_custom_call.1']
    #allocation5 [shape = 'u8[8192]{0}', space=vmem, size = 0x2000, scoped, tag = 'input window, operand 1, single buffered']
    #allocation6 [shape = 's32[1]{0}', space=sflag, size = 0x4, scoped, tag = 'scoped memory for tpu_custom_call.1']
    #allocation7 [shape = 'u8[8192]{0}', space=vmem, size = 0x2000, scoped, tag = 'input window, operand 2, single buffered']
    #allocation8 [shape = 'u8[16384]{0}', space=vmem, size = 0x4000, scoped, tag = 'input window, operand 3, single buffered']
    #allocation9 [shape = 's32[1]{0}', space=sflag, size = 0x4, scoped, tag = 'scoped memory for tpu_custom_call.1']
    #allocation10 [shape = 'u8[8192]{0}', space=vmem, size = 0x2000, scoped, tag = 'output window, operand 0, single buffered']
    %10 = vsyncpa [#allocation3], 0
    %11 = vsyncpa [#allocation6], 0
    %12 = vsyncpa [#allocation9], 0
    %13 = vsyncpa [#allocation4], 0
    // Predicated region
    $region2: #{tpu_custom_call.1} parent=1 // pred_check
      _
    $region3: #{tpu_custom_call.1} parent=1 // pred_check_branch
      %15 = sbr.rel (0) target = $region5
    $region4: #{tpu_custom_call.1} parent=1 // pred_region
      %s17 = ssub.s32 256, 256
      %18 = vsyncadd [#allocation3], %s17
      %s19 = sshll.u32 [#allocation2], 4
      %s20 = int_to_ptr.vmem [resolvable:$true] %s19
      %25 = dma.hbm_to_vmem [thread:$0]  %s0, 256, %s20, [#allocation3], 128, 128, 8
    $region5: #{tpu_custom_call.1} parent=1 // pred_fallthru
      _
    // Predicated region
    $region6: #{tpu_custom_call.1} parent=1 // pred_check
      _
    $region7: #{tpu_custom_call.1} parent=1 // pred_check_branch
      %27 = sbr.rel (0) target = $region9
    $region8: #{tpu_custom_call.1} parent=1 // pred_region
      %s29 = ssub.s32 256, 256
      %30 = vsyncadd [#allocation6], %s29
      %s31 = sshll.u32 [#allocation5], 4
      %s32 = int_to_ptr.vmem [resolvable:$true] %s31
      %37 = dma.hbm_to_vmem [thread:$0]  %s1, 256, %s32, [#allocation6], 128, 128, 8
    $region9: #{tpu_custom_call.1} parent=1 // pred_fallthru
      _
    // Predicated region
    $region10: #{tpu_custom_call.1} parent=1 // pred_check
      _
    $region11: #{tpu_custom_call.1} parent=1 // pred_check_branch
      %39 = sbr.rel (0) target = $region13
    $region12: #{tpu_custom_call.1} parent=1 // pred_region
      %s41 = ssub.s32 256, 256
      %42 = vsyncadd [#allocation6], %s41
      %s43 = sshll.u32 [#allocation7], 4
      %s44 = int_to_ptr.vmem [resolvable:$true] %s43
      %49 = dma.hbm_to_vmem [thread:$0]  %s2, 256, %s44, [#allocation6], 128, 128, 8
    $region13: #{tpu_custom_call.1} parent=1 // pred_fallthru
      _
    // Predicated region
    $region14: #{tpu_custom_call.1} parent=1 // pred_check
      _
    $region15: #{tpu_custom_call.1} parent=1 // pred_check_branch
      %51 = sbr.rel (0) target = $region17
    $region16: #{tpu_custom_call.1} parent=1 // pred_region
      %s53 = ssub.s32 512, 512
      %54 = vsyncadd [#allocation9], %s53
      %s55 = sshll.u32 [#allocation8], 4
      %s56 = int_to_ptr.vmem [resolvable:$true] %s55
      %61 = dma.hbm_to_vmem [thread:$0]  %s3, 512, %s56, [#allocation9], 128, 128, 8
    $region17: #{tpu_custom_call.1} parent=1 // pred_fallthru
      _
    // Predicated region
    $region18: #{tpu_custom_call.1} parent=1 // pred_check
      _
    $region19: #{tpu_custom_call.1} parent=1 // pred_check_branch
      %63 = sbr.rel (0) target = $region21
    $region20: #{tpu_custom_call.1} parent=1 // pred_region
      _
    $region21: #{tpu_custom_call.1} parent=1 // pred_fallthru
      _
    // Predicated region
    $region22: #{tpu_custom_call.1} parent=1 // pred_check
      _
    $region23: #{tpu_custom_call.1} parent=1 // pred_check_branch
      %65 = sbr.rel (0) target = $region25
    $region24: #{tpu_custom_call.1} parent=1 // pred_region
      %66 = dma.done [#allocation3], 256
    $region25: #{tpu_custom_call.1} parent=1 // pred_fallthru
      _
    // Predicated region
    $region26: #{tpu_custom_call.1} parent=1 // pred_check
      _
    $region27: #{tpu_custom_call.1} parent=1 // pred_check_branch
      %68 = sbr.rel (0) target = $region29
    $region28: #{tpu_custom_call.1} parent=1 // pred_region
      %69 = dma.done [#allocation6], 256
    $region29: #{tpu_custom_call.1} parent=1 // pred_fallthru
      _
    // Predicated region
    $region30: #{tpu_custom_call.1} parent=1 // pred_check
      _
    $region31: #{tpu_custom_call.1} parent=1 // pred_check_branch
      %71 = sbr.rel (0) target = $region33
    $region32: #{tpu_custom_call.1} parent=1 // pred_region
      %72 = dma.done [#allocation6], 256
    $region33: #{tpu_custom_call.1} parent=1 // pred_fallthru
      _
    // Predicated region
    $region34: #{tpu_custom_call.1} parent=1 // pred_check
      _
    $region35: #{tpu_custom_call.1} parent=1 // pred_check_branch
      %74 = sbr.rel (0) target = $region37
    $region36: #{tpu_custom_call.1} parent=1 // pred_region
      %75 = dma.done [#allocation9], 512
    $region37: #{tpu_custom_call.1} parent=1 // pred_fallthru
      _
    %v76 = vld [vmem:[#allocation2] sm:$0xff]
    %v77 = vld [vmem:[#allocation2 + $0x8] sm:$0xff]
    %v78 = vld [vmem:[#allocation5] sm:$0xff]
    %v79 = vld [vmem:[#allocation5 + $0x8] sm:$0xff]
    %v80 = vld [vmem:[#allocation7] sm:$0xff]
    %v81 = vld [vmem:[#allocation7 + $0x8] sm:$0xff]
    %v82 = vld [vmem:[#allocation8] sm:$0xff]
    %v83 = vld [vmem:[#allocation8 + $0x8] sm:$0xff]
    %v84 = vld [vmem:[#allocation8 + $0x10] sm:$0xff]
    %v85 = vld [vmem:[#allocation8 + $0x18] sm:$0xff]
    %v86 = vld [vmem:[%s4] sm:$0x1]
    %v88 = vlaneseq
    %v89 = vshrl.u32 %v88, 7
    %v90 = vsub.s32 0, %v89
    %v91 = vrot.slane %v86, %v90
    %vm93 = vcmask 261120
    %v95 = vsel %vm93, %v78, 0
    %v98 = vsel %vm93, %v79, 0
    %100 = vmatprep.subr.mxu0 0.0
    %101 = vmatpush1.msra.mxu0 %v82
    %102 = vmatprep.subr.mxu0 0.0
    %103 = vmatpush1.msra.mxu0 %v83
    %104 = vmatprep.subr.mxu0 0.0
    %105 = vmatpush1.msra.mxu0 %v84
    %106 = vmatprep.subr.mxu0 0.0
    %107 = vmatpush1.msra.mxu0 %v85
    %108 = vmatprep.subr.mxu0 0.0
    %109 = vmatpush1.msra.mxu0 0.0
    %110 = vmatprep.subr.mxu0 0.0
    %111 = vmatpush1.msra.mxu0 0.0
    %112 = vmatprep.subr.mxu0 0.0
    %113 = vmatpush1.msra.mxu0 0.0
    %114 = vmatprep.subr.mxu0 0.0
    %115 = vmatpush1.msra.mxu0 0.0
    %116 = vmatprep.subr.mxu0 0.0
    %117 = vmatpush1.msra.mxu0 0.0
    %118 = vmatprep.subr.mxu0 0.0
    %119 = vmatpush1.msra.mxu0 0.0
    %120 = vmatprep.subr.mxu0 0.0
    %121 = vmatpush1.msra.mxu0 0.0
    %122 = vmatprep.subr.mxu0 0.0
    %123 = vmatpush1.msra.mxu0 0.0
    %124 = vmatprep.subr.mxu0 0.0
    %125 = vmatpush1.msra.mxu0 0.0
    %126 = vmatprep.subr.mxu0 0.0
    %127 = vmatpush1.msra.mxu0 0.0
    %128 = vmatprep.subr.mxu0 0.0
    %129 = vmatpush1.msra.mxu0 0.0
    %130 = vmatprep.subr.mxu0 0.0
    %131 = vmatpush1.msra.mxu0 0.0
    %132 = vmatprep.subr.mxu0 0.0
    %133 = vmatpush1.msra.mxu0 0.0
    %134 = vmatprep.subr.mxu0 0.0
    %135 = vmatpush1.msra.mxu0 0.0
    %136 = vmatprep.subr.mxu0 0.0
    %137 = vmatpush1.msra.mxu0 0.0
    %138 = vmatprep.subr.mxu0 0.0
    %139 = vmatpush1.msra.mxu0 0.0
    %140 = vmatprep.subr.mxu0 0.0
    %141 = vmatpush1.msra.mxu0 0.0
    %142 = vmatprep.subr.mxu0 0.0
    %143 = vmatpush1.msra.mxu0 0.0
    %144 = vmatprep.subr.mxu0 0.0
    %145 = vmatpush1.msra.mxu0 0.0
    %146 = vmatprep.subr.mxu0 0.0
    %147 = vmatpush1.msra.mxu0 0.0
    %148 = vmatprep.subr.mxu0 0.0
    %149 = vmatpush1.msra.mxu0 0.0
    %150 = vmatprep.subr.mxu0 0.0
    %151 = vmatpush1.msra.mxu0 0.0
    %152 = vmatprep.subr.mxu0 0.0
    %153 = vmatpush1.msra.mxu0 0.0
    %154 = vmatprep.subr.mxu0 0.0
    %155 = vmatpush1.msra.mxu0 0.0
    %156 = vmatprep.subr.mxu0 0.0
    %157 = vmatpush1.msra.mxu0 0.0
    %158 = vmatprep.subr.mxu0 0.0
    %159 = vmatpush1.msra.mxu0 0.0
    %160 = vmatprep.subr.mxu0 0.0
    %161 = vmatpush1.msra.mxu0 0.0
    %162 = vmatprep.subr.mxu0 0.0
    %163 = vmatpush1.msra.mxu0 0.0
    %164 = vmatprep.mubr.f32.mxu0 0.0
    %165 = vmatmul.mubr.f32.gmra.mrb[0].mxu0 %v95
    %v166 = vpop.f32.mrb[0].mxu0
    %v167 = vadd.f32 %v91, %v166
    %v168 = vpop.f32.mrb[0].mxu0
    %169 = vmatprep.mubr.f32.mxu0 0.0
    %170 = vmatmul.mubr.f32.gmra.mrb[0].mxu0 %v98
    %v171 = vpop.f32.mrb[0].mxu0
    %v172 = vadd.f32 %v91, %v171
    %v173 = vpop.f32.mrb[0].mxu0
    %174 = vdwg.mxu0
    %v176 = vsel %vm93, %v76, 0
    %v179 = vsel %vm93, %v167, 0
    %181 = vmatprep.subr.mxu0 0.0
    %182 = vmatpush1.xpose.msra.mxu0 %v179
    %183 = vmatprep.subr.mxu0 0.0
    %184 = vmatpush1.xpose.msra.mxu0 0.0
    %185 = vmatprep.subr.mxu0 0.0
    %186 = vmatpush1.xpose.msra.mxu0 0.0
    %187 = vmatprep.subr.mxu0 0.0
    %188 = vmatpush1.xpose.msra.mxu0 0.0
    %189 = vmatprep.subr.mxu0 0.0
    %190 = vmatpush1.xpose.msra.mxu0 0.0
    %191 = vmatprep.subr.mxu0 0.0
    %192 = vmatpush1.xpose.msra.mxu0 0.0
    %193 = vmatprep.subr.mxu0 0.0
    %194 = vmatpush1.xpose.msra.mxu0 0.0
    %195 = vmatprep.subr.mxu0 0.0
    %196 = vmatpush1.xpose.msra.mxu0 0.0
    %197 = vmatprep.subr.mxu0 0.0
    %198 = vmatpush1.xpose.msra.mxu0 0.0
    %199 = vmatprep.subr.mxu0 0.0
    %200 = vmatpush1.xpose.msra.mxu0 0.0
    %201 = vmatprep.subr.mxu0 0.0
    %202 = vmatpush1.xpose.msra.mxu0 0.0
    %203 = vmatprep.subr.mxu0 0.0
    %204 = vmatpush1.xpose.msra.mxu0 0.0
    %205 = vmatprep.subr.mxu0 0.0
    %206 = vmatpush1.xpose.msra.mxu0 0.0
    %207 = vmatprep.subr.mxu0 0.0
    %208 = vmatpush1.xpose.msra.mxu0 0.0
    %209 = vmatprep.subr.mxu0 0.0
    %210 = vmatpush1.xpose.msra.mxu0 0.0
    %211 = vmatprep.subr.mxu0 0.0
    %212 = vmatpush1.xpose.msra.mxu0 0.0
    %213 = vmatprep.subr.mxu0 0.0
    %214 = vmatpush1.xpose.msra.mxu0 0.0
    %215 = vmatprep.subr.mxu0 0.0
    %216 = vmatpush1.xpose.msra.mxu0 0.0
    %217 = vmatprep.subr.mxu0 0.0
    %218 = vmatpush1.xpose.msra.mxu0 0.0
    %219 = vmatprep.subr.mxu0 0.0
    %220 = vmatpush1.xpose.msra.mxu0 0.0
    %221 = vmatprep.subr.mxu0 0.0
    %222 = vmatpush1.xpose.msra.mxu0 0.0
    %223 = vmatprep.subr.mxu0 0.0
    %224 = vmatpush1.xpose.msra.mxu0 0.0
    %225 = vmatprep.subr.mxu0 0.0
    %226 = vmatpush1.xpose.msra.mxu0 0.0
    %227 = vmatprep.subr.mxu0 0.0
    %228 = vmatpush1.xpose.msra.mxu0 0.0
    %229 = vmatprep.subr.mxu0 0.0
    %230 = vmatpush1.xpose.msra.mxu0 0.0
    %231 = vmatprep.subr.mxu0 0.0
    %232 = vmatpush1.xpose.msra.mxu0 0.0
    %233 = vmatprep.subr.mxu0 0.0
    %234 = vmatpush1.xpose.msra.mxu0 0.0
    %235 = vmatprep.subr.mxu0 0.0
    %236 = vmatpush1.xpose.msra.mxu0 0.0
    %237 = vmatprep.subr.mxu0 0.0
    %238 = vmatpush1.xpose.msra.mxu0 0.0
    %239 = vmatprep.subr.mxu0 0.0
    %240 = vmatpush1.xpose.msra.mxu0 0.0
    %241 = vmatprep.subr.mxu0 0.0
    %242 = vmatpush1.xpose.msra.mxu0 0.0
    %243 = vmatprep.subr.mxu0 0.0
    %244 = vmatpush1.xpose.msra.mxu0 0.0
    %245 = vmatprep.mubr.f32.mxu0 0.0
    %246 = vmatmul.mubr.f32.gmra.mrb[0].mxu0 %v176
    %v247 = vpop.f32.mrb[0].mxu0
    %v248 = vadd.f32 0.0, %v247
    %v249 = vpop.f32.mrb[0].mxu0
    %250 = vdwg.mxu0
    %v252 = vsel %vm93, %v77, 0
    %v255 = vsel %vm93, %v172, 0
    %257 = vmatprep.subr.mxu0 0.0
    %258 = vmatpush1.xpose.msra.mxu0 %v255
    %259 = vmatprep.subr.mxu0 0.0
    %260 = vmatpush1.xpose.msra.mxu0 0.0
    %261 = vmatprep.subr.mxu0 0.0
    %262 = vmatpush1.xpose.msra.mxu0 0.0
    %263 = vmatprep.subr.mxu0 0.0
    %264 = vmatpush1.xpose.msra.mxu0 0.0
    %265 = vmatprep.subr.mxu0 0.0
    %266 = vmatpush1.xpose.msra.mxu0 0.0
    %267 = vmatprep.subr.mxu0 0.0
    %268 = vmatpush1.xpose.msra.mxu0 0.0
    %269 = vmatprep.subr.mxu0 0.0
    %270 = vmatpush1.xpose.msra.mxu0 0.0
    %271 = vmatprep.subr.mxu0 0.0
    %272 = vmatpush1.xpose.msra.mxu0 0.0
    %273 = vmatprep.subr.mxu0 0.0
    %274 = vmatpush1.xpose.msra.mxu0 0.0
    %275 = vmatprep.subr.mxu0 0.0
    %276 = vmatpush1.xpose.msra.mxu0 0.0
    %277 = vmatprep.subr.mxu0 0.0
    %278 = vmatpush1.xpose.msra.mxu0 0.0
    %279 = vmatprep.subr.mxu0 0.0
    %280 = vmatpush1.xpose.msra.mxu0 0.0
    %281 = vmatprep.subr.mxu0 0.0
    %282 = vmatpush1.xpose.msra.mxu0 0.0
    %283 = vmatprep.subr.mxu0 0.0
    %284 = vmatpush1.xpose.msra.mxu0 0.0
    %285 = vmatprep.subr.mxu0 0.0
    %286 = vmatpush1.xpose.msra.mxu0 0.0
    %287 = vmatprep.subr.mxu0 0.0
    %288 = vmatpush1.xpose.msra.mxu0 0.0
    %289 = vmatprep.subr.mxu0 0.0
    %290 = vmatpush1.xpose.msra.mxu0 0.0
    %291 = vmatprep.subr.mxu0 0.0
    %292 = vmatpush1.xpose.msra.mxu0 0.0
    %293 = vmatprep.subr.mxu0 0.0
    %294 = vmatpush1.xpose.msra.mxu0 0.0
    %295 = vmatprep.subr.mxu0 0.0
    %296 = vmatpush1.xpose.msra.mxu0 0.0
    %297 = vmatprep.subr.mxu0 0.0
    %298 = vmatpush1.xpose.msra.mxu0 0.0
    %299 = vmatprep.subr.mxu0 0.0
    %300 = vmatpush1.xpose.msra.mxu0 0.0
    %301 = vmatprep.subr.mxu0 0.0
    %302 = vmatpush1.xpose.msra.mxu0 0.0
    %303 = vmatprep.subr.mxu0 0.0
    %304 = vmatpush1.xpose.msra.mxu0 0.0
    %305 = vmatprep.subr.mxu0 0.0
    %306 = vmatpush1.xpose.msra.mxu0 0.0
    %307 = vmatprep.subr.mxu0 0.0
    %308 = vmatpush1.xpose.msra.mxu0 0.0
    %309 = vmatprep.subr.mxu0 0.0
    %310 = vmatpush1.xpose.msra.mxu0 0.0
    %311 = vmatprep.subr.mxu0 0.0
    %312 = vmatpush1.xpose.msra.mxu0 0.0
    %313 = vmatprep.subr.mxu0 0.0
    %314 = vmatpush1.xpose.msra.mxu0 0.0
    %315 = vmatprep.subr.mxu0 0.0
    %316 = vmatpush1.xpose.msra.mxu0 0.0
    %317 = vmatprep.subr.mxu0 0.0
    %318 = vmatpush1.xpose.msra.mxu0 0.0
    %319 = vmatprep.subr.mxu0 0.0
    %320 = vmatpush1.xpose.msra.mxu0 0.0
    %321 = vmatprep.mubr.f32.mxu0 0.0
    %322 = vmatmul.mubr.f32.gmra.mrb[0].mxu0 %v252
    %v323 = vpop.f32.mrb[0].mxu0
    %v324 = vadd.f32 0.0, %v323
    %v325 = vpop.f32.mrb[0].mxu0
    %326 = vdwg.mxu0
    %vm327 = vcmask 64512
    %v328 = vsel %vm327, %v248, -inf
    %329 = vmax.xlane.f32.xlu0 %v328
    %v330 = vpop.xlane.xlu0 %329
    %v331 = vsel %vm327, %v324, -inf
    %332 = vmax.xlane.f32.xlu0 %v331
    %v333 = vpop.xlane.xlu0 %332
    %v334 = vsub.f32 %v248, %v330
    %v335 = vsub.f32 %v324, %v333
    %v336 = vmul.f32 %v334, 1.442695
    %v337 = vpow.pop %v336
    %v338 = vmul.f32 %v335, 1.442695
    %v339 = vpow.pop %v338
    %v340 = vsel %vm327, %v337, 0.0
    %341 = vadd.xlane.f32.xlu0 %v340
    %v342 = vpop.xlane.xlu0 %341
    %v343 = vsel %vm327, %v339, 0.0
    %344 = vadd.xlane.f32.xlu0 %v343
    %v345 = vpop.xlane.xlu0 %344
    %v346 = vrcp.pop %v342
    %v347 = vrcp.pop %v345
    %v348 = vmul.f32 %v337, %v346
    %v349 = vmul.f32 %v339, %v347
    %v351 = vsel %vm327, %v348, 0
    %353 = vmatprep.subr.mxu0 0.0
    %354 = vmatpush1.msra.mxu0 %v80
    %355 = vmatprep.subr.mxu0 0.0
    %356 = vmatpush1.msra.mxu0 0.0
    %357 = vmatprep.subr.mxu0 0.0
    %358 = vmatpush1.msra.mxu0 0.0
    %359 = vmatprep.subr.mxu0 0.0
    %360 = vmatpush1.msra.mxu0 0.0
    %361 = vmatprep.subr.mxu0 0.0
    %362 = vmatpush1.msra.mxu0 0.0
    %363 = vmatprep.subr.mxu0 0.0
    %364 = vmatpush1.msra.mxu0 0.0
    %365 = vmatprep.subr.mxu0 0.0
    %366 = vmatpush1.msra.mxu0 0.0
    %367 = vmatprep.subr.mxu0 0.0
    %368 = vmatpush1.msra.mxu0 0.0
    %369 = vmatprep.subr.mxu0 0.0
    %370 = vmatpush1.msra.mxu0 0.0
    %371 = vmatprep.subr.mxu0 0.0
    %372 = vmatpush1.msra.mxu0 0.0
    %373 = vmatprep.subr.mxu0 0.0
    %374 = vmatpush1.msra.mxu0 0.0
    %375 = vmatprep.subr.mxu0 0.0
    %376 = vmatpush1.msra.mxu0 0.0
    %377 = vmatprep.subr.mxu0 0.0
    %378 = vmatpush1.msra.mxu0 0.0
    %379 = vmatprep.subr.mxu0 0.0
    %380 = vmatpush1.msra.mxu0 0.0
    %381 = vmatprep.subr.mxu0 0.0
    %382 = vmatpush1.msra.mxu0 0.0
    %383 = vmatprep.subr.mxu0 0.0
    %384 = vmatpush1.msra.mxu0 0.0
    %385 = vmatprep.subr.mxu0 0.0
    %386 = vmatpush1.msra.mxu0 0.0
    %387 = vmatprep.subr.mxu0 0.0
    %388 = vmatpush1.msra.mxu0 0.0
    %389 = vmatprep.subr.mxu0 0.0
    %390 = vmatpush1.msra.mxu0 0.0
    %391 = vmatprep.subr.mxu0 0.0
    %392 = vmatpush1.msra.mxu0 0.0
    %393 = vmatprep.subr.mxu0 0.0
    %394 = vmatpush1.msra.mxu0 0.0
    %395 = vmatprep.subr.mxu0 0.0
    %396 = vmatpush1.msra.mxu0 0.0
    %397 = vmatprep.subr.mxu0 0.0
    %398 = vmatpush1.msra.mxu0 0.0
    %399 = vmatprep.subr.mxu0 0.0
    %400 = vmatpush1.msra.mxu0 0.0
    %401 = vmatprep.subr.mxu0 0.0
    %402 = vmatpush1.msra.mxu0 0.0
    %403 = vmatprep.subr.mxu0 0.0
    %404 = vmatpush1.msra.mxu0 0.0
    %405 = vmatprep.subr.mxu0 0.0
    %406 = vmatpush1.msra.mxu0 0.0
    %407 = vmatprep.subr.mxu0 0.0
    %408 = vmatpush1.msra.mxu0 0.0
    %409 = vmatprep.subr.mxu0 0.0
    %410 = vmatpush1.msra.mxu0 0.0
    %411 = vmatprep.subr.mxu0 0.0
    %412 = vmatpush1.msra.mxu0 0.0
    %413 = vmatprep.subr.mxu0 0.0
    %414 = vmatpush1.msra.mxu0 0.0
    %415 = vmatprep.subr.mxu0 0.0
    %416 = vmatpush1.msra.mxu0 0.0
    %417 = vmatprep.mubr.f32.mxu0 0.0
    %418 = vmatmul.mubr.f32.gmra.mrb[0].mxu0 %v351
    %v419 = vpop.f32.mrb[0].mxu0
    %v420 = vadd.f32 0.0, %v419
    %v421 = vpop.f32.mrb[0].mxu0
    %422 = vdwg.mxu0
    %v424 = vsel %vm327, %v349, 0
    %426 = vmatprep.subr.mxu0 0.0
    %427 = vmatpush1.msra.mxu0 %v81
    %428 = vmatprep.subr.mxu0 0.0
    %429 = vmatpush1.msra.mxu0 0.0
    %430 = vmatprep.subr.mxu0 0.0
    %431 = vmatpush1.msra.mxu0 0.0
    %432 = vmatprep.subr.mxu0 0.0
    %433 = vmatpush1.msra.mxu0 0.0
    %434 = vmatprep.subr.mxu0 0.0
    %435 = vmatpush1.msra.mxu0 0.0
    %436 = vmatprep.subr.mxu0 0.0
    %437 = vmatpush1.msra.mxu0 0.0
    %438 = vmatprep.subr.mxu0 0.0
    %439 = vmatpush1.msra.mxu0 0.0
    %440 = vmatprep.subr.mxu0 0.0
    %441 = vmatpush1.msra.mxu0 0.0
    %442 = vmatprep.subr.mxu0 0.0
    %443 = vmatpush1.msra.mxu0 0.0
    %444 = vmatprep.subr.mxu0 0.0
    %445 = vmatpush1.msra.mxu0 0.0
    %446 = vmatprep.subr.mxu0 0.0
    %447 = vmatpush1.msra.mxu0 0.0
    %448 = vmatprep.subr.mxu0 0.0
    %449 = vmatpush1.msra.mxu0 0.0
    %450 = vmatprep.subr.mxu0 0.0
    %451 = vmatpush1.msra.mxu0 0.0
    %452 = vmatprep.subr.mxu0 0.0
    %453 = vmatpush1.msra.mxu0 0.0
    %454 = vmatprep.subr.mxu0 0.0
    %455 = vmatpush1.msra.mxu0 0.0
    %456 = vmatprep.subr.mxu0 0.0
    %457 = vmatpush1.msra.mxu0 0.0
    %458 = vmatprep.subr.mxu0 0.0
    %459 = vmatpush1.msra.mxu0 0.0
    %460 = vmatprep.subr.mxu0 0.0
    %461 = vmatpush1.msra.mxu0 0.0
    %462 = vmatprep.subr.mxu0 0.0
    %463 = vmatpush1.msra.mxu0 0.0
    %464 = vmatprep.subr.mxu0 0.0
    %465 = vmatpush1.msra.mxu0 0.0
    %466 = vmatprep.subr.mxu0 0.0
    %467 = vmatpush1.msra.mxu0 0.0
    %468 = vmatprep.subr.mxu0 0.0
    %469 = vmatpush1.msra.mxu0 0.0
    %470 = vmatprep.subr.mxu0 0.0
    %471 = vmatpush1.msra.mxu0 0.0
    %472 = vmatprep.subr.mxu0 0.0
    %473 = vmatpush1.msra.mxu0 0.0
    %474 = vmatprep.subr.mxu0 0.0
    %475 = vmatpush1.msra.mxu0 0.0
    %476 = vmatprep.subr.mxu0 0.0
    %477 = vmatpush1.msra.mxu0 0.0
    %478 = vmatprep.subr.mxu0 0.0
    %479 = vmatpush1.msra.mxu0 0.0
    %480 = vmatprep.subr.mxu0 0.0
    %481 = vmatpush1.msra.mxu0 0.0
    %482 = vmatprep.subr.mxu0 0.0
    %483 = vmatpush1.msra.mxu0 0.0
    %484 = vmatprep.subr.mxu0 0.0
    %485 = vmatpush1.msra.mxu0 0.0
    %486 = vmatprep.subr.mxu0 0.0
    %487 = vmatpush1.msra.mxu0 0.0
    %488 = vmatprep.subr.mxu0 0.0
    %489 = vmatpush1.msra.mxu0 0.0
    %490 = vmatprep.mubr.f32.mxu0 0.0
    %491 = vmatmul.mubr.f32.gmra.mrb[0].mxu0 %v424
    %v492 = vpop.f32.mrb[0].mxu0
    %v493 = vadd.f32 0.0, %v492
    %v494 = vpop.f32.mrb[0].mxu0
    %495 = vdwg.mxu0
    %496 = vst.msk [vmem:[#allocation10] sm:$0xff] %vm93, %v420
    %497 = vst.msk [vmem:[#allocation10 + $0x8] sm:$0xff] %vm93, %v493
    // Predicated region
    $region38: #{tpu_custom_call.1} parent=1 // pred_check
      _
    $region39: #{tpu_custom_call.1} parent=1 // pred_check_branch
      %499 = sbr.rel (0) target = $region41
    $region40: #{tpu_custom_call.1} parent=1 // pred_region
      %s501 = ssub.s32 256, 256
      %502 = vsyncadd [#allocation4], %s501
      %s503 = sshll.u32 [#allocation10], 4
      %s504 = int_to_ptr.vmem [resolvable:$true] %s503
      %509 = dma.vmem_to_hbm [thread:$0]  %s504, 256, %s5, [#allocation4], 128, 128, 8
    $region41: #{tpu_custom_call.1} parent=1 // pred_fallthru
      _
    // Predicated region
    $region42: #{tpu_custom_call.1} parent=1 // pred_check
      _
    $region43: #{tpu_custom_call.1} parent=1 // pred_check_branch
      %511 = sbr.rel (0) target = $region45
    $region44: #{tpu_custom_call.1} parent=1 // pred_region
      %512 = dma.done [#allocation4], 256
    $region45: #{tpu_custom_call.1} parent=1 // pred_fallthru
      _
    %513 = vsyncpa [#allocation3], 1
    %514 = vsyncpa [#allocation6], 1
    %515 = vsyncpa [#allocation9], 1
    %516 = vsyncpa [#allocation4], 1

</llo_original>
